<compile_context>
chip_gen: v6e
topology: v6e:2x2x1
jax: 0.10.0
libtpu: 0.0.40
codegen_flags: <defaults>
</compile_context>

<pallas_src>
import functools

import numpy as np
import jax
import jax.numpy as jnp
from jax.experimental import pallas as pl
from jax.experimental.pallas import tpu as pltpu

MONTH_SIZE = 13
WEEKDAY_SIZE = 7
DAY_SIZE = 32
HOUR_SIZE = 24
MIN_SIZE = 4
TABLE_SIZES = (MONTH_SIZE, WEEKDAY_SIZE, DAY_SIZE, HOUR_SIZE, MIN_SIZE)
NUM_FEATS = len(TABLE_SIZES)

# Compact cumulative offsets: (0, 13, 20, 52, 76); total rows = 80.
FEATURE_OFFSETS = tuple(int(x) for x in np.cumsum((0,) + TABLE_SIZES[:-1]))
K_TOTAL = sum(TABLE_SIZES)          # 80
K_PAD = 128                         # pad contraction dim to one MXU-friendly block


def _round_up(x: int, m: int) -> int:
    return ((x + m - 1) // m) * m


def fixed_embedding_table(num_in_feats: int, num_out_feats: int) -> jnp.ndarray:
    """Deterministic sinusoidal table, identical to FixedEmbedding.__init__."""
    assert num_out_feats % 2 == 0, "FixedEmbedding requires an even d_model"
    pos = jnp.arange(0.0, float(num_in_feats), dtype=jnp.float32)[:, None]   # (N, 1)
    m = jnp.arange(0.0, float(num_out_feats), 2.0, dtype=jnp.float32)
    m = jnp.exp(m * -(np.log(10000.0) / num_out_feats))                      # (D/2,)
    emb = jnp.zeros((num_in_feats, num_out_feats), jnp.float32)
    emb = emb.at[:, 0::2].set(jnp.sin(pos * m))
    emb = emb.at[:, 1::2].set(jnp.cos(pos * m))
    return emb


def build_fused_tables(num_out_feats: int):
    """Pack the 5 fixed tables into one compact (K_PAD, D) matrix.

    Row window [off_i, off_i + size_i) holds table i; rows [80, 128) are zero.
    Returned as a bf16 hi/lo pair so the MXU runs bf16 passes while the
    reconstructed value hi + lo carries ~16 bits of mantissa.
    """
    flat = jnp.zeros((K_PAD, num_out_feats), jnp.float32)
    for off, size in zip(FEATURE_OFFSETS, TABLE_SIZES):
        flat = flat.at[off:off + size, :].set(fixed_embedding_table(size, num_out_feats))
    hi = flat.astype(jnp.bfloat16)
    lo = (flat - hi.astype(jnp.float32)).astype(jnp.bfloat16)
    return hi, lo


def temporal_embedding_kernel(idx_ref, hi_ref, lo_ref, out_ref):
    # idx_ref: (NF, TM)    int32, already offset into the compact table windows
    # hi_ref : (K_PAD, D)  bf16 fused table (hi part), grid-resident
    # lo_ref : (K_PAD, D)  bf16 fused table (lo part), grid-resident
    # out_ref: (TM, D)     summed embeddings
    nf, tm = idx_ref.shape
    k_pad = hi_ref.shape[0]

    # Transposed multi-hot (K_PAD, TM).  The 5 feature windows are disjoint, so
    # a boolean OR of the per-feature one-hots is exact; cast to bf16 once
    # (0/1 are exact in bf16) instead of five f32 cast + add passes.
    iota = jax.lax.broadcasted_iota(jnp.int32, (k_pad, tm), 0)         # sublane iota
    hot = idx_ref[0:1, :] == iota                                      # (K_PAD, TM) bool
    for i in range(1, nf):                                             # static, small (5)
        hot = jnp.logical_or(hot, idx_ref[i:i + 1, :] == iota)
    multihot = hot.astype(jnp.bfloat16)

    # The per-feature accumulation happens *inside* the fused MXU contraction
    # (f32 accumulate).  Contract over dim 0 of both operands: (K,TM)x(K,D)->(TM,D).
    dn = (((0,), (0,)), ((), ()))
    acc = jax.lax.dot_general(multihot, hi_ref[...], dn,
                              preferred_element_type=jnp.float32)
    acc = acc + jax.lax.dot_general(multihot, lo_ref[...], dn,
                                    preferred_element_type=jnp.float32)
    out_ref[...] = acc.astype(out_ref.dtype)


@functools.partial(jax.jit, static_argnames=("tile_rows", "out_dtype"))
def temporal_embedding(time_stamps: jnp.ndarray,
                       table_hi: jnp.ndarray,
                       table_lo: jnp.ndarray,
                       *,
                       tile_rows: int = 1024,
                       out_dtype=jnp.float32) -> jnp.ndarray:
    """time_stamps: (B, T, 5) int; table_hi/lo: (K_PAD, D) bf16.  Returns (B, T, D)."""
    B, T, NF = time_stamps.shape
    assert NF == NUM_FEATS, f"expected {NUM_FEATS} time features, got {NF}"
    K, D = table_hi.shape
    BT = B * T

    # Row tiling.  Single tile covers small inputs; otherwise TM is a multiple
    # of 128 so the (NF, TM) index block stays a legal lane-dense tile.
    if BT <= tile_rows:
        TM = _round_up(max(BT, 8), 8)
        BT_pad = TM
    else:
        TM = _round_up(tile_rows, 128)
        BT_pad = _round_up(BT, TM)
    num_tiles = BT_pad // TM

    # Offset each feature's index into its compact window (done in XLA), then
    # transpose to (NF, BT_pad) so the per-tile index block is lane-dense.
    # TODO(synk): PyTorch nn.Embedding raises on out-of-range indices; the fused
    # one-hot gather silently contributes zeros for such indices instead.
    offs = jnp.asarray(FEATURE_OFFSETS, dtype=jnp.int32)
    idx = time_stamps.reshape(BT, NF).astype(jnp.int32) + offs[None, :]
    idx = idx.T                                                       # (NF, BT)
    if BT_pad != BT:
        idx = jnp.pad(idx, ((0, 0), (0, BT_pad - BT)))                # padded rows sliced off

    out_isize = jnp.dtype(out_dtype).itemsize
    cost = pl.CostEstimate(
        flops=2 * 2 * BT_pad * K * D,                                 # two bf16 matmuls
        transcendentals=0,
        bytes_accessed=BT_pad * NF * 4 + 2 * K * D * 2 + BT_pad * D * out_isize,
    )

    # VMEM estimate per grid step (double-buffered in/out + resident tables +
    # multi-hot / f32 accumulator intermediates).  Only raise the scoped limit
    # when we approach v5e's 16 MiB default; cap well under v7x's 64 MiB phys.
    est_vmem = (2 * TM * D * out_isize
                + 2 * 8 * _round_up(TM, 128) * 4
                + 2 * 2 * K * D * 2
                + K * TM * 2 + TM * D * 4)
    vmem_limit = None if est_vmem < 12 * 1024 * 1024 else min(2 * est_vmem, 60 * 1024 * 1024)

    out = pl.pallas_call(
        temporal_embedding_kernel,
        out_shape=jax.ShapeDtypeStruct((BT_pad, D), out_dtype),
        grid=(num_tiles,),
        in_specs=[
            pl.BlockSpec((NUM_FEATS, TM), lambda m: (0, m)),   # lane-dense index tile
            pl.BlockSpec((K, D), lambda m: (0, 0)),            # fused table hi (resident)
            pl.BlockSpec((K, D), lambda m: (0, 0)),            # fused table lo (resident)
        ],
        out_specs=pl.BlockSpec((TM, D), lambda m: (m, 0)),
        compiler_params=pltpu.CompilerParams(
            dimension_semantics=("parallel",),                 # shard BT rows across cores
            vmem_limit_bytes=vmem_limit,
        ),
        cost_estimate=cost,
    )(idx, table_hi, table_lo)

    if BT_pad != BT:
        out = out[:BT]                                         # static ints only
    return out.reshape(B, T, D)


if __name__ == "__main__":
    B, T, D = 2, 8, 32

    key = jax.random.PRNGKey(0)
    keys = jax.random.split(key, NUM_FEATS)
    cols = [
        jax.random.randint(keys[i], (B, T, 1), 0, TABLE_SIZES[i], dtype=jnp.int32)
        for i in range(NUM_FEATS)
    ]
    time_stamps = jnp.concatenate(cols, axis=-1)               # (B, T, 5)

    table_hi, table_lo = build_fused_tables(D)                 # (128, 32) bf16 each

    out = temporal_embedding(time_stamps, table_hi, table_lo)
    out = jax.block_until_ready(out)

    # Pure-JAX reference: direct f32 table lookups summed over features.
    ref = jnp.zeros((B, T, D), jnp.float32)
    for i in range(NUM_FEATS):
        tbl_i = fixed_embedding_table(TABLE_SIZES[i], D)
        ref = ref + tbl_i[time_stamps[:, :, i]]

    # bf16 hi/lo split carries ~16 mantissa bits: worst-case abs error per
    # summed entry is ~8e-5 for 5 features of magnitude <= 1.
    np.testing.assert_allclose(np.asarray(out), np.asarray(ref), rtol=2e-4, atol=2e-4)

    print("KERNEL_OK")
</pallas_src>

<mosaic_0001>
module attributes {stable_mosaic.version = 11 : i64} {
  func.func @temporal_embedding_kernel(%arg0: i32, %arg1: memref<5x16xi32, #tpu.memory_space<vmem>>, %arg2: memref<128x32xbf16, #tpu.memory_space<vmem>>, %arg3: memref<128x32xbf16, #tpu.memory_space<vmem>>, %arg4: memref<16x32xf32, #tpu.memory_space<vmem>>) attributes {dimension_semantics = [#tpu.dimension_semantics<parallel>], iteration_bounds = array<i64: 1>, scalar_prefetch = 0 : i64, scratch_operands = 0 : i64, tpu.core_type = #tpu.core_type<tc>, window_params = [{transform_indices = @transform_0, window_bounds = array<i64: 5, 16>}, {pipeline_mode = #tpu.pipeline_mode<synchronous>, transform_indices = @transform_1, window_bounds = array<i64: 128, 32>}, {pipeline_mode = #tpu.pipeline_mode<synchronous>, transform_indices = @transform_2, window_bounds = array<i64: 128, 32>}, {transform_indices = @transform_3, window_bounds = array<i64: 16, 32>}]} {
    %0 = tpu.iota {dimensions = array<i32: 0>} : vector<128x16xi32>
    %c0 = arith.constant 0 : index
    %c0_0 = arith.constant 0 : index
    %1 = vector.load %arg1[%c0, %c0_0] : memref<5x16xi32, #tpu.memory_space<vmem>>, vector<1x16xi32>
    %2 = vector.broadcast %1 : vector<1x16xi32> to vector<128x16xi32>
    %3 = arith.cmpi eq, %2, %0 : vector<128x16xi32>
    %c1 = arith.constant 1 : index
    %c0_1 = arith.constant 0 : index
    %4 = vector.load %arg1[%c1, %c0_1] : memref<5x16xi32, #tpu.memory_space<vmem>>, vector<1x16xi32>
    %5 = vector.broadcast %4 : vector<1x16xi32> to vector<128x16xi32>
    %6 = arith.cmpi eq, %5, %0 : vector<128x16xi32>
    %7 = arith.ori %3, %6 : vector<128x16xi1>
    %c2 = arith.constant 2 : index
    %c0_2 = arith.constant 0 : index
    %8 = vector.load %arg1[%c2, %c0_2] : memref<5x16xi32, #tpu.memory_space<vmem>>, vector<1x16xi32>
    %9 = vector.broadcast %8 : vector<1x16xi32> to vector<128x16xi32>
    %10 = arith.cmpi eq, %9, %0 : vector<128x16xi32>
    %11 = arith.ori %7, %10 : vector<128x16xi1>
    %c3 = arith.constant 3 : index
    %c0_3 = arith.constant 0 : index
    %12 = vector.load %arg1[%c3, %c0_3] : memref<5x16xi32, #tpu.memory_space<vmem>>, vector<1x16xi32>
    %13 = vector.broadcast %12 : vector<1x16xi32> to vector<128x16xi32>
    %14 = arith.cmpi eq, %13, %0 : vector<128x16xi32>
    %15 = arith.ori %11, %14 : vector<128x16xi1>
    %c4 = arith.constant 4 : index
    %c0_4 = arith.constant 0 : index
    %16 = vector.load %arg1[%c4, %c0_4] : memref<5x16xi32, #tpu.memory_space<vmem>>, vector<1x16xi32>
    %17 = vector.broadcast %16 : vector<1x16xi32> to vector<128x16xi32>
    %18 = arith.cmpi eq, %17, %0 : vector<128x16xi32>
    %19 = arith.ori %15, %18 : vector<128x16xi1>
    %20 = arith.extui %19 : vector<128x16xi1> to vector<128x16xi32>
    %21 = arith.sitofp %20 : vector<128x16xi32> to vector<128x16xf32>
    %22 = arith.truncf %21 : vector<128x16xf32> to vector<128x16xbf16>
    %c0_5 = arith.constant 0 : index
    %c0_6 = arith.constant 0 : index
    %23 = vector.load %arg2[%c0_5, %c0_6] : memref<128x32xbf16, #tpu.memory_space<vmem>>, vector<128x32xbf16>
    %cst = arith.constant dense<0.000000e+00> : vector<16x32xf32>
    %24 = tpu.matmul %22, %23, %cst {dimension_numbers = #tpu.dot_dimension_numbers<[0], [0], [1], [1], [0, 1, 1, 1], [], []>} : vector<128x16xbf16>, vector<128x32xbf16>, vector<16x32xf32> -> vector<16x32xf32>
    %c0_7 = arith.constant 0 : index
    %c0_8 = arith.constant 0 : index
    %25 = vector.load %arg3[%c0_7, %c0_8] : memref<128x32xbf16, #tpu.memory_space<vmem>>, vector<128x32xbf16>
    %cst_9 = arith.constant dense<0.000000e+00> : vector<16x32xf32>
    %26 = tpu.matmul %22, %25, %cst_9 {dimension_numbers = #tpu.dot_dimension_numbers<[0], [0], [1], [1], [0, 1, 1, 1], [], []>} : vector<128x16xbf16>, vector<128x32xbf16>, vector<16x32xf32> -> vector<16x32xf32>
    %27 = arith.addf %24, %26 : vector<16x32xf32>
    %c0_10 = arith.constant 0 : index
    %c0_11 = arith.constant 0 : index
    %28 = vector.load %arg4[%c0_10, %c0_11] : memref<16x32xf32, #tpu.memory_space<vmem>>, vector<16x32xf32>
    tpu.vector_store %arg4[%c0_10, %c0_11], %27 {strides = array<i32>} : memref<16x32xf32, #tpu.memory_space<vmem>>, vector<16x32xf32>,
    return
  }
  func.func @transform_0(%arg0: i32) -> (i32, i32) {
    %c0_i32 = arith.constant 0 : i32
    %c0_i32_0 = arith.constant 0 : i32
    return %c0_i32, %arg0 : i32, i32
  }
  func.func @transform_1(%arg0: i32) -> (i32, i32) {
    %c0_i32 = arith.constant 0 : i32
    %c0_i32_0 = arith.constant 0 : i32
    %c0_i32_1 = arith.constant 0 : i32
    return %c0_i32, %c0_i32_0 : i32, i32
  }
  func.func @transform_2(%arg0: i32) -> (i32, i32) {
    %c0_i32 = arith.constant 0 : i32
    %c0_i32_0 = arith.constant 0 : i32
    %c0_i32_1 = arith.constant 0 : i32
    return %c0_i32, %c0_i32_0 : i32, i32
  }
  func.func @transform_3(%arg0: i32) -> (i32, i32) {
    %c0_i32 = arith.constant 0 : i32
    %c0_i32_0 = arith.constant 0 : i32
    return %arg0, %c0_i32 : i32, i32
  }
}

</mosaic_0001>

<llo_original>
// kernel: temporal_embedding.1
$region0: #{temporal_embedding.1}
  #allocation0 [shape = 'u32[]', space=smem, size = 0x4, offset = 0x4, fixed_abs, tag = 'smem constant byte address 0x4 - core index']
  #allocation1 [shape = 'u32[144,128]{1,0:T(1,128)}', space=vmem, size = 0x12000, scoped, tag = 'internal scratch']
  %s0 = inlined_call_operand.vmem [shape: s32[5,16], index: 0, kind: input, shape index: {}]
  %s1 = inlined_call_operand.vmem [shape: bf16[128,32], index: 1, kind: input, shape index: {}]
  %s2 = inlined_call_operand.vmem [shape: bf16[128,32], index: 2, kind: input, shape index: {}]
  %s3 = inlined_call_operand.hbm [shape: f32[16,32], index: 3, kind: output, shape index: {}]
  %s4 = sld [smem:[#allocation0]]
  $region22: #{temporal_embedding.1} parent=0
    _
  %s6 = ssub.s32 1, %s4
  %s7 = scalar_select 0, %s6, %s4
  $region1: #{temporal_embedding.1} parent=0
    #allocation2 [shape = 'u8[8192]{0}', space=vmem, size = 0x2000, scoped, tag = 'output window, operand 0, single buffered']
    #allocation3 [shape = 's32[1]{0}', space=sflag, size = 0x4, scoped, tag = 'scoped memory for temporal_embedding.1']
    %8 = vsyncpa [#allocation3], 0
    // Predicated region
    $region2: #{temporal_embedding.1} parent=1 // pred_check
      _
    $region3: #{temporal_embedding.1} parent=1 // pred_check_branch
      %10 = sbr.rel (0) target = $region5
    $region4: #{temporal_embedding.1} parent=1 // pred_region
      _
    $region5: #{temporal_embedding.1} parent=1 // pred_fallthru
      _
    // Predicated region
    $region6: #{temporal_embedding.1} parent=1 // pred_check
      _
    $region7: #{temporal_embedding.1} parent=1 // pred_check_branch
      %12 = sbr.rel (0) target = $region9
    $region8: #{temporal_embedding.1} parent=1 // pred_region
      _
    $region9: #{temporal_embedding.1} parent=1 // pred_fallthru
      _
    // Predicated region
    $region10: #{temporal_embedding.1} parent=1 // pred_check
      _
    $region11: #{temporal_embedding.1} parent=1 // pred_check_branch
      %14 = sbr.rel (0) target = $region13
    $region12: #{temporal_embedding.1} parent=1 // pred_region
      _
    $region13: #{temporal_embedding.1} parent=1 // pred_fallthru
      _
    %v16 = vlaneseq
    %v17 = vshrl.u32 %v16, 7
    %v18 = vadd.s32 %v17, 8
    %v19 = vadd.s32 %v17, 16
    %v20 = vadd.s32 %v17, 24
    %v21 = vadd.s32 %v17, 32
    %v22 = vadd.s32 %v17, 40
    %v23 = vadd.s32 %v17, 48
    %v24 = vadd.s32 %v17, 56
    %v25 = vadd.s32 %v17, 64
    %v26 = vadd.s32 %v17, 72
    %v27 = vadd.s32 %v17, 80
    %v28 = vadd.s32 %v17, 88
    %v29 = vadd.s32 %v17, 96
    %v30 = vadd.s32 %v17, 104
    %v31 = vadd.s32 %v17, 112
    %v32 = vadd.s32 %v17, 120
    %v33 = vld [vmem:[%s0] sm:$0x1]
    %v34 = vlaneseq
    %v35 = vshrl.u32 %v34, 7
    %v36 = vsub.s32 0, %v35
    %v37 = vrot.slane %v33, %v36
    %vm38 = vcmp.eq.s32.totalorder %v37, %v17
    %vm39 = vcmp.eq.s32.totalorder %v37, %v18
    %vm40 = vcmp.eq.s32.totalorder %v37, %v19
    %vm41 = vcmp.eq.s32.totalorder %v37, %v20
    %vm42 = vcmp.eq.s32.totalorder %v37, %v21
    %vm43 = vcmp.eq.s32.totalorder %v37, %v22
    %vm44 = vcmp.eq.s32.totalorder %v37, %v23
    %vm45 = vcmp.eq.s32.totalorder %v37, %v24
    %vm46 = vcmp.eq.s32.totalorder %v37, %v25
    %vm47 = vcmp.eq.s32.totalorder %v37, %v26
    %vm48 = vcmp.eq.s32.totalorder %v37, %v27
    %vm49 = vcmp.eq.s32.totalorder %v37, %v28
    %vm50 = vcmp.eq.s32.totalorder %v37, %v29
    %vm51 = vcmp.eq.s32.totalorder %v37, %v30
    %vm52 = vcmp.eq.s32.totalorder %v37, %v31
    %vm53 = vcmp.eq.s32.totalorder %v37, %v32
    %v54 = vld [vmem:[%s0 + $0x1] sm:$0x1]
    %v55 = vlaneseq
    %v56 = vshrl.u32 %v55, 7
    %v57 = vsub.s32 0, %v56
    %v58 = vrot.slane %v54, %v57
    %vm59 = vcmp.eq.s32.totalorder %v58, %v17
    %vm60 = vcmp.eq.s32.totalorder %v58, %v18
    %vm61 = vcmp.eq.s32.totalorder %v58, %v19
    %vm62 = vcmp.eq.s32.totalorder %v58, %v20
    %vm63 = vcmp.eq.s32.totalorder %v58, %v21
    %vm64 = vcmp.eq.s32.totalorder %v58, %v22
    %vm65 = vcmp.eq.s32.totalorder %v58, %v23
    %vm66 = vcmp.eq.s32.totalorder %v58, %v24
    %vm67 = vcmp.eq.s32.totalorder %v58, %v25
    %vm68 = vcmp.eq.s32.totalorder %v58, %v26
    %vm69 = vcmp.eq.s32.totalorder %v58, %v27
    %vm70 = vcmp.eq.s32.totalorder %v58, %v28
    %vm71 = vcmp.eq.s32.totalorder %v58, %v29
    %vm72 = vcmp.eq.s32.totalorder %v58, %v30
    %vm73 = vcmp.eq.s32.totalorder %v58, %v31
    %vm74 = vcmp.eq.s32.totalorder %v58, %v32
    %vm75 = vmor %vm38, %vm59
    %vm76 = vmor %vm39, %vm60
    %vm77 = vmor %vm40, %vm61
    %vm78 = vmor %vm41, %vm62
    %vm79 = vmor %vm42, %vm63
    %vm80 = vmor %vm43, %vm64
    %vm81 = vmor %vm44, %vm65
    %vm82 = vmor %vm45, %vm66
    %vm83 = vmor %vm46, %vm67
    %vm84 = vmor %vm47, %vm68
    %vm85 = vmor %vm48, %vm69
    %vm86 = vmor %vm49, %vm70
    %vm87 = vmor %vm50, %vm71
    %vm88 = vmor %vm51, %vm72
    %vm89 = vmor %vm52, %vm73
    %vm90 = vmor %vm53, %vm74
    %v91 = vld [vmem:[%s0 + $0x2] sm:$0x1]
    %v92 = vlaneseq
    %v93 = vshrl.u32 %v92, 7
    %v94 = vsub.s32 0, %v93
    %v95 = vrot.slane %v91, %v94
    %vm96 = vcmp.eq.s32.totalorder %v95, %v17
    %vm97 = vcmp.eq.s32.totalorder %v95, %v18
    %vm98 = vcmp.eq.s32.totalorder %v95, %v19
    %vm99 = vcmp.eq.s32.totalorder %v95, %v20
    %vm100 = vcmp.eq.s32.totalorder %v95, %v21
    %vm101 = vcmp.eq.s32.totalorder %v95, %v22
    %vm102 = vcmp.eq.s32.totalorder %v95, %v23
    %vm103 = vcmp.eq.s32.totalorder %v95, %v24
    %vm104 = vcmp.eq.s32.totalorder %v95, %v25
    %vm105 = vcmp.eq.s32.totalorder %v95, %v26
    %vm106 = vcmp.eq.s32.totalorder %v95, %v27
    %vm107 = vcmp.eq.s32.totalorder %v95, %v28
    %vm108 = vcmp.eq.s32.totalorder %v95, %v29
    %vm109 = vcmp.eq.s32.totalorder %v95, %v30
    %vm110 = vcmp.eq.s32.totalorder %v95, %v31
    %vm111 = vcmp.eq.s32.totalorder %v95, %v32
    %vm112 = vmor %vm75, %vm96
    %vm113 = vmor %vm76, %vm97
    %vm114 = vmor %vm77, %vm98
    %vm115 = vmor %vm78, %vm99
    %vm116 = vmor %vm79, %vm100
    %vm117 = vmor %vm80, %vm101
    %vm118 = vmor %vm81, %vm102
    %vm119 = vmor %vm82, %vm103
    %vm120 = vmor %vm83, %vm104
    %vm121 = vmor %vm84, %vm105
    %vm122 = vmor %vm85, %vm106
    %vm123 = vmor %vm86, %vm107
    %vm124 = vmor %vm87, %vm108
    %vm125 = vmor %vm88, %vm109
    %vm126 = vmor %vm89, %vm110
    %vm127 = vmor %vm90, %vm111
    %v128 = vld [vmem:[%s0 + $0x3] sm:$0x1]
    %v129 = vlaneseq
    %v130 = vshrl.u32 %v129, 7
    %v131 = vsub.s32 0, %v130
    %v132 = vrot.slane %v128, %v131
    %vm133 = vcmp.eq.s32.totalorder %v132, %v17
    %vm134 = vcmp.eq.s32.totalorder %v132, %v18
    %vm135 = vcmp.eq.s32.totalorder %v132, %v19
    %vm136 = vcmp.eq.s32.totalorder %v132, %v20
    %vm137 = vcmp.eq.s32.totalorder %v132, %v21
    %vm138 = vcmp.eq.s32.totalorder %v132, %v22
    %vm139 = vcmp.eq.s32.totalorder %v132, %v23
    %vm140 = vcmp.eq.s32.totalorder %v132, %v24
    %vm141 = vcmp.eq.s32.totalorder %v132, %v25
    %vm142 = vcmp.eq.s32.totalorder %v132, %v26
    %vm143 = vcmp.eq.s32.totalorder %v132, %v27
    %vm144 = vcmp.eq.s32.totalorder %v132, %v28
    %vm145 = vcmp.eq.s32.totalorder %v132, %v29
    %vm146 = vcmp.eq.s32.totalorder %v132, %v30
    %vm147 = vcmp.eq.s32.totalorder %v132, %v31
    %vm148 = vcmp.eq.s32.totalorder %v132, %v32
    %vm149 = vmor %vm112, %vm133
    %vm150 = vmor %vm113, %vm134
    %vm151 = vmor %vm114, %vm135
    %vm152 = vmor %vm115, %vm136
    %vm153 = vmor %vm116, %vm137
    %vm154 = vmor %vm117, %vm138
    %vm155 = vmor %vm118, %vm139
    %vm156 = vmor %vm119, %vm140
    %vm157 = vmor %vm120, %vm141
    %vm158 = vmor %vm121, %vm142
    %vm159 = vmor %vm122, %vm143
    %vm160 = vmor %vm123, %vm144
    %vm161 = vmor %vm124, %vm145
    %vm162 = vmor %vm125, %vm146
    %vm163 = vmor %vm126, %vm147
    %vm164 = vmor %vm127, %vm148
    %v165 = vld [vmem:[%s0 + $0x4] sm:$0x1]
    %v166 = vlaneseq
    %v167 = vshrl.u32 %v166, 7
    %v168 = vsub.s32 0, %v167
    %v169 = vrot.slane %v165, %v168
    %vm170 = vcmp.eq.s32.totalorder %v169, %v17
    %vm171 = vcmp.eq.s32.totalorder %v169, %v18
    %vm172 = vcmp.eq.s32.totalorder %v169, %v19
    %vm173 = vcmp.eq.s32.totalorder %v169, %v20
    %vm174 = vcmp.eq.s32.totalorder %v169, %v21
    %vm175 = vcmp.eq.s32.totalorder %v169, %v22
    %vm176 = vcmp.eq.s32.totalorder %v169, %v23
    %vm177 = vcmp.eq.s32.totalorder %v169, %v24
    %vm178 = vcmp.eq.s32.totalorder %v169, %v25
    %vm179 = vcmp.eq.s32.totalorder %v169, %v26
    %vm180 = vcmp.eq.s32.totalorder %v169, %v27
    %vm181 = vcmp.eq.s32.totalorder %v169, %v28
    %vm182 = vcmp.eq.s32.totalorder %v169, %v29
    %vm183 = vcmp.eq.s32.totalorder %v169, %v30
    %vm184 = vcmp.eq.s32.totalorder %v169, %v31
    %vm185 = vcmp.eq.s32.totalorder %v169, %v32
    %vm186 = vmor %vm149, %vm170
    %vm187 = vmor %vm150, %vm171
    %vm188 = vmor %vm151, %vm172
    %vm189 = vmor %vm152, %vm173
    %vm190 = vmor %vm153, %vm174
    %vm191 = vmor %vm154, %vm175
    %vm192 = vmor %vm155, %vm176
    %vm193 = vmor %vm156, %vm177
    %vm194 = vmor %vm157, %vm178
    %vm195 = vmor %vm158, %vm179
    %vm196 = vmor %vm159, %vm180
    %vm197 = vmor %vm160, %vm181
    %vm198 = vmor %vm161, %vm182
    %vm199 = vmor %vm162, %vm183
    %vm200 = vmor %vm163, %vm184
    %vm201 = vmor %vm164, %vm185
    %v202 = vsel %vm186, 1, 0
    %v203 = vsel %vm187, 1, 0
    %v204 = vsel %vm188, 1, 0
    %v205 = vsel %vm189, 1, 0
    %v206 = vsel %vm190, 1, 0
    %v207 = vsel %vm191, 1, 0
    %v208 = vsel %vm192, 1, 0
    %v209 = vsel %vm193, 1, 0
    %v210 = vsel %vm194, 1, 0
    %v211 = vsel %vm195, 1, 0
    %v212 = vsel %vm196, 1, 0
    %v213 = vsel %vm197, 1, 0
    %v214 = vsel %vm198, 1, 0
    %v215 = vsel %vm199, 1, 0
    %v216 = vsel %vm200, 1, 0
    %v217 = vsel %vm201, 1, 0
    %v218 = vcvt.s32.f32 %v202
    %v219 = vcvt.s32.f32 %v203
    %v220 = vcvt.s32.f32 %v204
    %v221 = vcvt.s32.f32 %v205
    %v222 = vcvt.s32.f32 %v206
    %v223 = vcvt.s32.f32 %v207
    %v224 = vcvt.s32.f32 %v208
    %v225 = vcvt.s32.f32 %v209
    %v226 = vcvt.s32.f32 %v210
    %v227 = vcvt.s32.f32 %v211
    %v228 = vcvt.s32.f32 %v212
    %v229 = vcvt.s32.f32 %v213
    %v230 = vcvt.s32.f32 %v214
    %v231 = vcvt.s32.f32 %v215
    %v232 = vcvt.s32.f32 %v216
    %v233 = vcvt.s32.f32 %v217
    %v234 = vpack.c.bf16 %v219, %v218
    %v235 = vpack.c.bf16 %v221, %v220
    %v236 = vpack.c.bf16 %v223, %v222
    %v237 = vpack.c.bf16 %v225, %v224
    %v238 = vpack.c.bf16 %v227, %v226
    %v239 = vpack.c.bf16 %v229, %v228
    %v240 = vpack.c.bf16 %v231, %v230
    %v241 = vpack.c.bf16 %v233, %v232
    %v242 = vld [vmem:[%s1] sm:$0xf]
    %v243 = vld [vmem:[%s1 + $0x4] sm:$0xf]
    %v244 = vld [vmem:[%s1 + $0x8] sm:$0xf]
    %v245 = vld [vmem:[%s1 + $0xc] sm:$0xf]
    %v246 = vld [vmem:[%s1 + $0x10] sm:$0xf]
    %v247 = vld [vmem:[%s1 + $0x14] sm:$0xf]
    %v248 = vld [vmem:[%s1 + $0x18] sm:$0xf]
    %v249 = vld [vmem:[%s1 + $0x1c] sm:$0xf]
    %v250 = vld [vmem:[%s1 + $0x20] sm:$0xf]
    %v251 = vld [vmem:[%s1 + $0x24] sm:$0xf]
    %v252 = vld [vmem:[%s1 + $0x28] sm:$0xf]
    %v253 = vld [vmem:[%s1 + $0x2c] sm:$0xf]
    %v254 = vld [vmem:[%s1 + $0x30] sm:$0xf]
    %v255 = vld [vmem:[%s1 + $0x34] sm:$0xf]
    %v256 = vld [vmem:[%s1 + $0x38] sm:$0xf]
    %v257 = vld [vmem:[%s1 + $0x3c] sm:$0xf]
    %v258 = vld [vmem:[%s2] sm:$0xf]
    %v259 = vld [vmem:[%s2 + $0x4] sm:$0xf]
    %v260 = vld [vmem:[%s2 + $0x8] sm:$0xf]
    %v261 = vld [vmem:[%s2 + $0xc] sm:$0xf]
    %v262 = vld [vmem:[%s2 + $0x10] sm:$0xf]
    %v263 = vld [vmem:[%s2 + $0x14] sm:$0xf]
    %v264 = vld [vmem:[%s2 + $0x18] sm:$0xf]
    %v265 = vld [vmem:[%s2 + $0x1c] sm:$0xf]
    %v266 = vld [vmem:[%s2 + $0x20] sm:$0xf]
    %v267 = vld [vmem:[%s2 + $0x24] sm:$0xf]
    %v268 = vld [vmem:[%s2 + $0x28] sm:$0xf]
    %v269 = vld [vmem:[%s2 + $0x2c] sm:$0xf]
    %v270 = vld [vmem:[%s2 + $0x30] sm:$0xf]
    %v271 = vld [vmem:[%s2 + $0x34] sm:$0xf]
    %v272 = vld [vmem:[%s2 + $0x38] sm:$0xf]
    %v273 = vld [vmem:[%s2 + $0x3c] sm:$0xf]
    %274 = vxpose.xlu0.c.b16.start [1/8] %v234, 128
    %275 = vxpose.xlu0.c.b16.cont [2/8] %v235, 128
    %276 = vxpose.xlu0.c.b16.cont [3/8] %v236, 128
    %277 = vxpose.xlu0.c.b16.cont [4/8] %v237, 128
    %278 = vxpose.xlu0.c.b16.cont [5/8] %v238, 128
    %279 = vxpose.xlu0.c.b16.cont [6/8] %v239, 128
    %280 = vxpose.xlu0.c.b16.cont [7/8] %v240, 128
    %281 = vxpose.xlu0.c.b16.end [8/8] %v241, 128
    %v282 = vpop.trf.xlu0
    %v283 = vpop.trf.xlu0
    %v284 = vpop.trf.xlu0
    %v285 = vpop.trf.xlu0
    %v286 = vpop.trf.xlu0
    %v287 = vpop.trf.xlu0
    %v288 = vpop.trf.xlu0
    %v289 = vpop.trf.xlu0
    %v306 = vunpack.c.l.b16 %v258
    %v307 = vunpack.c.l.b16 %v259
    %v308 = vunpack.c.l.b16 %v260
    %v309 = vunpack.c.l.b16 %v261
    %v310 = vunpack.c.l.b16 %v262
    %v311 = vunpack.c.l.b16 %v263
    %v312 = vunpack.c.l.b16 %v264
    %v313 = vunpack.c.l.b16 %v265
    %v314 = vunpack.c.l.b16 %v266
    %v315 = vunpack.c.l.b16 %v267
    %v316 = vunpack.c.l.b16 %v268
    %v317 = vunpack.c.l.b16 %v269
    %v318 = vunpack.c.l.b16 %v270
    %v319 = vunpack.c.l.b16 %v271
    %v320 = vunpack.c.l.b16 %v272
    %v321 = vunpack.c.l.b16 %v273
    %v322 = vpack.c.b16 %v307, %v306
    %v323 = vpack.c.b16 %v309, %v308
    %v324 = vpack.c.b16 %v311, %v310
    %v325 = vpack.c.b16 %v313, %v312
    %v326 = vpack.c.b16 %v315, %v314
    %v327 = vpack.c.b16 %v317, %v316
    %v328 = vpack.c.b16 %v319, %v318
    %v329 = vpack.c.b16 %v321, %v320
    %338 = vmatprep.subr.bf16.mxu0 0
    %339 = vmatpush1.bf16.msra.mxu0 %v329
    %340 = vmatprep.subr.bf16.mxu0 0
    %341 = vmatpush1.bf16.msra.mxu0 %v328
    %342 = vmatprep.subr.bf16.mxu0 0
    %343 = vmatpush1.bf16.msra.mxu0 %v327
    %344 = vmatprep.subr.bf16.mxu0 0
    %345 = vmatpush1.bf16.msra.mxu0 %v326
    %346 = vmatprep.subr.bf16.mxu0 0
    %347 = vmatpush1.bf16.msra.mxu0 %v325
    %348 = vmatprep.subr.bf16.mxu0 0
    %349 = vmatpush1.bf16.msra.mxu0 %v324
    %350 = vmatprep.subr.bf16.mxu0 0
    %351 = vmatpush1.bf16.msra.mxu0 %v323
    %352 = vmatprep.subr.bf16.mxu0 0
    %353 = vmatpush1.bf16.msra.mxu0 %v322
    %354 = vmatprep.subr.bf16.mxu0 0
    %355 = vmatpush2.bf16.msra.mxu0 0
    %356 = vmatprep.subr.bf16.mxu0 0
    %357 = vmatpush2.bf16.msra.mxu0 0
    %358 = vmatprep.subr.bf16.mxu0 0
    %359 = vmatpush2.bf16.msra.mxu0 0
    %360 = vmatprep.subr.bf16.mxu0 0
    %361 = vmatpush2.bf16.msra.mxu0 0
    %362 = vmatprep.subr.bf16.mxu0 0
    %363 = vmatpush2.bf16.msra.mxu0 0
    %364 = vmatprep.subr.bf16.mxu0 0
    %365 = vmatpush2.bf16.msra.mxu0 0
    %366 = vmatprep.subr.bf16.mxu0 0
    %367 = vmatpush2.bf16.msra.mxu0 0
    %368 = vmatprep.subr.bf16.mxu0 0
    %369 = vmatpush2.bf16.msra.mxu0 0
    %370 = vmatprep.mubr.bf16.mxu0 0
    %371 = vmatmul.mubr.bf16.gmra.mxu0 %v282
    %v372 = vpop.f32.mrf.mxu0
    %v373 = vadd.f32 0.0, %v372
    %v374 = vpop.f32.mrf.mxu0
    %v375 = vpop.f32.mrf.mxu0
    %v376 = vadd.f32 0.0, %v375
    %v377 = vpop.f32.mrf.mxu0
    %378 = vdwg.mxu0
    %v395 = vunpack.c.l.b16 %v242
    %v396 = vunpack.c.l.b16 %v243
    %v397 = vunpack.c.l.b16 %v244
    %v398 = vunpack.c.l.b16 %v245
    %v399 = vunpack.c.l.b16 %v246
    %v400 = vunpack.c.l.b16 %v247
    %v401 = vunpack.c.l.b16 %v248
    %v402 = vunpack.c.l.b16 %v249
    %v403 = vunpack.c.l.b16 %v250
    %v404 = vunpack.c.l.b16 %v251
    %v405 = vunpack.c.l.b16 %v252
    %v406 = vunpack.c.l.b16 %v253
    %v407 = vunpack.c.l.b16 %v254
    %v408 = vunpack.c.l.b16 %v255
    %v409 = vunpack.c.l.b16 %v256
    %v410 = vunpack.c.l.b16 %v257
    %v411 = vpack.c.b16 %v396, %v395
    %v412 = vpack.c.b16 %v398, %v397
    %v413 = vpack.c.b16 %v400, %v399
    %v414 = vpack.c.b16 %v402, %v401
    %v415 = vpack.c.b16 %v404, %v403
    %v416 = vpack.c.b16 %v406, %v405
    %v417 = vpack.c.b16 %v408, %v407
    %v418 = vpack.c.b16 %v410, %v409
    %427 = vmatprep.subr.bf16.mxu0 0
    %428 = vmatpush1.bf16.msra.mxu0 %v418
    %429 = vmatprep.subr.bf16.mxu0 0
    %430 = vmatpush1.bf16.msra.mxu0 %v417
    %431 = vmatprep.subr.bf16.mxu0 0
    %432 = vmatpush1.bf16.msra.mxu0 %v416
    %433 = vmatprep.subr.bf16.mxu0 0
    %434 = vmatpush1.bf16.msra.mxu0 %v415
    %435 = vmatprep.subr.bf16.mxu0 0
    %436 = vmatpush1.bf16.msra.mxu0 %v414
    %437 = vmatprep.subr.bf16.mxu0 0
    %438 = vmatpush1.bf16.msra.mxu0 %v413
    %439 = vmatprep.subr.bf16.mxu0 0
    %440 = vmatpush1.bf16.msra.mxu0 %v412
    %441 = vmatprep.subr.bf16.mxu0 0
    %442 = vmatpush1.bf16.msra.mxu0 %v411
    %443 = vmatprep.subr.bf16.mxu0 0
    %444 = vmatpush2.bf16.msra.mxu0 0
    %445 = vmatprep.subr.bf16.mxu0 0
    %446 = vmatpush2.bf16.msra.mxu0 0
    %447 = vmatprep.subr.bf16.mxu0 0
    %448 = vmatpush2.bf16.msra.mxu0 0
    %449 = vmatprep.subr.bf16.mxu0 0
    %450 = vmatpush2.bf16.msra.mxu0 0
    %451 = vmatprep.subr.bf16.mxu0 0
    %452 = vmatpush2.bf16.msra.mxu0 0
    %453 = vmatprep.subr.bf16.mxu0 0
    %454 = vmatpush2.bf16.msra.mxu0 0
    %455 = vmatprep.subr.bf16.mxu0 0
    %456 = vmatpush2.bf16.msra.mxu0 0
    %457 = vmatprep.subr.bf16.mxu0 0
    %458 = vmatpush2.bf16.msra.mxu0 0
    %459 = vmatprep.mubr.bf16.mxu0 0
    %460 = vmatmul.mubr.bf16.gmra.mxu0 %v282
    %v461 = vpop.f32.mrf.mxu0
    %v462 = vadd.f32 %v373, %v461
    %v463 = vpop.f32.mrf.mxu0
    %v464 = vpop.f32.mrf.mxu0
    %v465 = vadd.f32 %v376, %v464
    %v466 = vpop.f32.mrf.mxu0
    %467 = vdwg.mxu0
    %vm468 = vcmask 261120
    %469 = vst.msk [vmem:[#allocation2] sm:$0xff] %vm468, %v462
    %470 = vst.msk [vmem:[#allocation2 + $0x8] sm:$0xff] %vm468, %v465
    // Predicated region
    $region14: #{temporal_embedding.1} parent=1 // pred_check
      _
    $region15: #{temporal_embedding.1} parent=1 // pred_check_branch
      %472 = sbr.rel (0) target = $region17
    $region16: #{temporal_embedding.1} parent=1 // pred_region
      %s474 = ssub.s32 256, 256
      %475 = vsyncadd [#allocation3], %s474
      %s476 = sshll.u32 [#allocation2], 4
      %s477 = int_to_ptr.vmem [resolvable:$true] %s476
      %482 = dma.vmem_to_hbm [thread:$0]  %s477, 256, %s3, [#allocation3], 128, 128, 8
    $region17: #{temporal_embedding.1} parent=1 // pred_fallthru
      _
    // Predicated region
    $region18: #{temporal_embedding.1} parent=1 // pred_check
      _
    $region19: #{temporal_embedding.1} parent=1 // pred_check_branch
      %484 = sbr.rel (0) target = $region21
    $region20: #{temporal_embedding.1} parent=1 // pred_region
      %485 = dma.done [#allocation3], 256
    $region21: #{temporal_embedding.1} parent=1 // pred_fallthru
      _
    %486 = vsyncpa [#allocation3], 1

</llo_original>
